<compile_context>
chip_gen: v6e
topology: v6e:2x2x1
jax: 0.10.0
libtpu: 0.0.40
codegen_flags: <defaults>
</compile_context>

<pallas_src>
import functools

import jax
import jax.numpy as jnp
from jax.experimental import pallas as pl
from jax.experimental.pallas import tpu as pltpu

EPS = 1e-5  # nn.InstanceNorm2d default (affine=False, track_running_stats=False)


def _relunorm_kernel(x_ref, o_ref, *, inv_count):
    # x_ref block: (TR rows, Lp lanes); rows are (n, c) pairs, lanes are the
    # (zero-padded) flattened spatial dim.
    x = x_ref[...]
    y = jnp.maximum(x, 0.0).astype(jnp.float32)            # ReLU
    # Both reductions computed from y directly (no mean->center->var chain).
    # Padded lanes are zero after ReLU so they contribute nothing to the sums;
    # inv_count = 1 / (true H*W), so mean/var are exact.
    s1 = jnp.sum(y, axis=-1, keepdims=True)
    s2 = jnp.sum(y * y, axis=-1, keepdims=True)
    mean = s1 * inv_count
    var = jnp.maximum(s2 * inv_count - mean * mean, 0.0)    # biased variance
    scale = jax.lax.rsqrt(var + EPS)                        # EUP
    o_ref[...] = ((y - mean) * scale).astype(o_ref.dtype)


def relu_norm(x, *, target_block_bytes=1 << 20):
    """x: (N, C, H, W) -> InstanceNorm2d(relu(x)) with affine=False, eps=1e-5."""
    N, C, H, W = x.shape
    S = H * W
    rows = N * C
    itemsize = jnp.dtype(x.dtype).itemsize

    # Lane-dense last dim: pad spatial to a multiple of 128.
    Lp = ((S + 127) // 128) * 128
    # Row tile: multiple of 8 (f32 sublane granularity), sized so a block is
    # roughly target_block_bytes (~1 MiB) but never bigger than needed.
    bytes_per_row = Lp * itemsize
    tr = max(8, (target_block_bytes // bytes_per_row) // 8 * 8)
    rows8 = ((rows + 7) // 8) * 8
    tr = min(tr, rows8)
    num_blocks = pl.cdiv(rows, tr)
    rows_pad = num_blocks * tr

    xf = x.reshape(rows, S)
    if rows_pad != rows or Lp != S:
        xf = jnp.pad(xf, ((0, rows_pad - rows), (0, Lp - S)))

    block_bytes = tr * Lp * itemsize
    # Budget: up to 3 input buffers + 2 output buffers + headroom; keep well
    # under v7x's 64 MiB physical VMEM per TensorCore.
    vmem_limit = int(min(48 << 20, max(16 << 20, 8 * block_bytes)))

    in_spec_kwargs = {}
    if num_blocks >= 4:
        # Deeper input pipelining only pays off with enough grid steps.
        in_spec_kwargs["pipeline_mode"] = pl.Buffered(3)

    out = pl.pallas_call(
        functools.partial(_relunorm_kernel, inv_count=1.0 / float(S)),
        out_shape=jax.ShapeDtypeStruct((rows_pad, Lp), x.dtype),
        grid=(num_blocks,),
        in_specs=[pl.BlockSpec((tr, Lp), lambda r: (r, 0), **in_spec_kwargs)],
        out_specs=pl.BlockSpec((tr, Lp), lambda r: (r, 0)),
        compiler_params=pltpu.CompilerParams(
            dimension_semantics=("parallel",),
            vmem_limit_bytes=vmem_limit),
    )(xf)
    return out[:rows, :S].reshape(N, C, H, W)


def relu_norm_ref(x):
    """Pure-JAX reference matching the PyTorch ReluNorm forward."""
    y = jnp.maximum(x, 0.0)
    mean = jnp.mean(y, axis=(2, 3), keepdims=True)
    var = jnp.mean((y - mean) ** 2, axis=(2, 3), keepdims=True)
    return (y - mean) / jnp.sqrt(var + EPS)


if __name__ == "__main__":
    key = jax.random.PRNGKey(0)
    # Second shape (14x14 -> 196 lanes) exercises the lane-padding path.
    for shape in [(2, 4, 16, 16), (2, 4, 14, 14)]:
        key, sub = jax.random.split(key)
        x = jax.random.normal(sub, shape, dtype=jnp.float32)
        out = jax.block_until_ready(relu_norm(x))
        ref = relu_norm_ref(x)
        assert out.shape == shape
        err = float(jnp.max(jnp.abs(out - ref)))
        assert err < 1e-4, err
    print("KERNEL_OK")
</pallas_src>

<mosaic_0001>
module attributes {stable_mosaic.version = 11 : i64} {
  func.func @_relunorm_kernel(%arg0: i32, %arg1: memref<8x256xf32, #tpu.memory_space<vmem>>, %arg2: memref<8x256xf32, #tpu.memory_space<vmem>>) attributes {dimension_semantics = [#tpu.dimension_semantics<parallel>], iteration_bounds = array<i64: 1>, scalar_prefetch = 0 : i64, scratch_operands = 0 : i64, tpu.core_type = #tpu.core_type<tc>, window_params = [{transform_indices = @transform_0, window_bounds = array<i64: 8, 256>}, {transform_indices = @transform_1, window_bounds = array<i64: 8, 256>}]} {
    %c0 = arith.constant 0 : index
    %c0_0 = arith.constant 0 : index
    %0 = vector.load %arg1[%c0, %c0_0] : memref<8x256xf32, #tpu.memory_space<vmem>>, vector<8x256xf32>
    %cst = arith.constant 0.000000e+00 : f32
    %1 = vector.broadcast %cst : f32 to vector<8x256xf32>
    %2 = arith.maximumf %0, %1 : vector<8x256xf32>
    %cst_1 = arith.constant dense<0.000000e+00> : vector<8xf32>
    %3 = vector.multi_reduction <add>, %2, %cst_1 [1] : vector<8x256xf32> to vector<8xf32>
    %4 = vector.shape_cast %3 : vector<8xf32> to vector<8x1xf32>
    %5 = arith.mulf %2, %2 : vector<8x256xf32>
    %cst_2 = arith.constant dense<0.000000e+00> : vector<8xf32>
    %6 = vector.multi_reduction <add>, %5, %cst_2 [1] : vector<8x256xf32> to vector<8xf32>
    %7 = vector.shape_cast %6 : vector<8xf32> to vector<8x1xf32>
    %cst_3 = arith.constant 3.906250e-03 : f32
    %8 = vector.broadcast %cst_3 : f32 to vector<8x1xf32>
    %9 = arith.mulf %4, %8 : vector<8x1xf32>
    %cst_4 = arith.constant 3.906250e-03 : f32
    %10 = vector.broadcast %cst_4 : f32 to vector<8x1xf32>
    %11 = arith.mulf %7, %10 : vector<8x1xf32>
    %12 = arith.mulf %9, %9 : vector<8x1xf32>
    %13 = arith.subf %11, %12 : vector<8x1xf32>
    %cst_5 = arith.constant 0.000000e+00 : f32
    %14 = vector.broadcast %cst_5 : f32 to vector<8x1xf32>
    %15 = arith.maximumf %13, %14 : vector<8x1xf32>
    %cst_6 = arith.constant 9.99999974E-6 : f32
    %16 = vector.broadcast %cst_6 : f32 to vector<8x1xf32>
    %17 = arith.addf %15, %16 : vector<8x1xf32>
    %18 = math.rsqrt %17 : vector<8x1xf32>
    %19 = vector.broadcast %9 : vector<8x1xf32> to vector<8x256xf32>
    %20 = arith.subf %2, %19 : vector<8x256xf32>
    %21 = vector.broadcast %18 : vector<8x1xf32> to vector<8x256xf32>
    %22 = arith.mulf %20, %21 : vector<8x256xf32>
    %c0_7 = arith.constant 0 : index
    %c0_8 = arith.constant 0 : index
    %23 = vector.load %arg2[%c0_7, %c0_8] : memref<8x256xf32, #tpu.memory_space<vmem>>, vector<8x256xf32>
    tpu.vector_store %arg2[%c0_7, %c0_8], %22 {strides = array<i32>} : memref<8x256xf32, #tpu.memory_space<vmem>>, vector<8x256xf32>,
    return
  }
  func.func @transform_0(%arg0: i32) -> (i32, i32) {
    %c0_i32 = arith.constant 0 : i32
    %c0_i32_0 = arith.constant 0 : i32
    return %arg0, %c0_i32 : i32, i32
  }
  func.func @transform_1(%arg0: i32) -> (i32, i32) {
    %c0_i32 = arith.constant 0 : i32
    %c0_i32_0 = arith.constant 0 : i32
    return %arg0, %c0_i32 : i32, i32
  }
}

</mosaic_0001>

<llo_original>
// kernel: tpu_custom_call.1
$region0: #{tpu_custom_call.1}
  #allocation0 [shape = 'u32[]', space=smem, size = 0x4, offset = 0x4, fixed_abs, tag = 'smem constant byte address 0x4 - core index']
  #allocation1 [shape = 'u32[144,128]{1,0:T(1,128)}', space=vmem, size = 0x12000, scoped, tag = 'internal scratch']
  %s0 = inlined_call_operand.hbm [shape: f32[8,256], index: 0, kind: input, shape index: {}]
  %s1 = inlined_call_operand.hbm [shape: f32[8,256], index: 1, kind: output, shape index: {}]
  %s2 = sld [smem:[#allocation0]]
  $region18: #{tpu_custom_call.1} parent=0
    _
  %s4 = ssub.s32 1, %s2
  %s5 = scalar_select 0, %s4, %s2
  $region1: #{tpu_custom_call.1} parent=0
    #allocation2 [shape = 'u8[8192]{0}', space=vmem, size = 0x2000, scoped, tag = 'input window, operand 0, single buffered']
    #allocation3 [shape = 's32[1]{0}', space=sflag, size = 0x4, scoped, tag = 'scoped memory for tpu_custom_call.1']
    #allocation4 [shape = 's32[1]{0}', space=sflag, size = 0x4, scoped, tag = 'scoped memory for tpu_custom_call.1']
    #allocation5 [shape = 'u8[8192]{0}', space=vmem, size = 0x2000, scoped, tag = 'output window, operand 0, single buffered']
    %6 = vsyncpa [#allocation3], 0
    %7 = vsyncpa [#allocation4], 0
    // Predicated region
    $region2: #{tpu_custom_call.1} parent=1 // pred_check
      _
    $region3: #{tpu_custom_call.1} parent=1 // pred_check_branch
      %9 = sbr.rel (0) target = $region5
    $region4: #{tpu_custom_call.1} parent=1 // pred_region
      %s11 = ssub.s32 256, 256
      %12 = vsyncadd [#allocation3], %s11
      %s14 = sshll.u32 [#allocation2], 4
      %s15 = int_to_ptr.vmem [resolvable:$true] %s14
      %17 = dma.hbm_to_vmem [thread:$0]  %s0, 256, %s15, [#allocation3]
    $region5: #{tpu_custom_call.1} parent=1 // pred_fallthru
      _
    // Predicated region
    $region6: #{tpu_custom_call.1} parent=1 // pred_check
      _
    $region7: #{tpu_custom_call.1} parent=1 // pred_check_branch
      %19 = sbr.rel (0) target = $region9
    $region8: #{tpu_custom_call.1} parent=1 // pred_region
      %20 = dma.done [#allocation3], 256
    $region9: #{tpu_custom_call.1} parent=1 // pred_fallthru
      _
    %v21 = vld [vmem:[#allocation2] sm:$0xff]
    %v22 = vld [vmem:[#allocation2 + $0x8] sm:$0xff]
    %v23 = vmax.f32 %v21, 0.0
    %v24 = vmax.f32 %v22, 0.0
    %v25 = vadd.f32 %v23, %v24
    %26 = vadd.xlane.f32.xlu0 %v25
    %v27 = vpop.xlane.xlu0 %26
    %v28 = vmul.f32 %v23, %v23
    %v29 = vmul.f32 %v24, %v24
    %v30 = vadd.f32 %v28, %v29
    %31 = vadd.xlane.f32.xlu0 %v30
    %v32 = vpop.xlane.xlu0 %31
    %v33 = vmul.f32 %v27, 0.00390625
    %v34 = vmul.f32 %v32, 0.00390625
    %v35 = vmul.f32 %v33, %v33
    %v36 = vsub.f32 %v34, %v35
    %v37 = vmax.f32 %v36, 0.0
    %v38 = vadd.f32 %v37, 1e-05
    %v39 = vrsqrt.pop %v38
    %v40 = vsub.f32 %v23, %v33
    %v41 = vsub.f32 %v24, %v33
    %v42 = vmul.f32 %v40, %v39
    %v43 = vmul.f32 %v41, %v39
    %44 = vst [vmem:[#allocation5] sm:$0xff] %v42
    %45 = vst [vmem:[#allocation5 + $0x8] sm:$0xff] %v43
    // Predicated region
    $region10: #{tpu_custom_call.1} parent=1 // pred_check
      _
    $region11: #{tpu_custom_call.1} parent=1 // pred_check_branch
      %47 = sbr.rel (0) target = $region13
    $region12: #{tpu_custom_call.1} parent=1 // pred_region
      %s49 = ssub.s32 256, 256
      %50 = vsyncadd [#allocation4], %s49
      %s52 = sshll.u32 [#allocation5], 4
      %s53 = int_to_ptr.vmem [resolvable:$true] %s52
      %55 = dma.vmem_to_hbm [thread:$0]  %s53, 256, %s1, [#allocation4]
    $region13: #{tpu_custom_call.1} parent=1 // pred_fallthru
      _
    // Predicated region
    $region14: #{tpu_custom_call.1} parent=1 // pred_check
      _
    $region15: #{tpu_custom_call.1} parent=1 // pred_check_branch
      %57 = sbr.rel (0) target = $region17
    $region16: #{tpu_custom_call.1} parent=1 // pred_region
      %58 = dma.done [#allocation4], 256
    $region17: #{tpu_custom_call.1} parent=1 // pred_fallthru
      _
    %59 = vsyncpa [#allocation3], 1
    %60 = vsyncpa [#allocation4], 1

</llo_original>
